<compile_context>
chip_gen: v7x
topology: tpu7x:2x2x1
jax: 0.10.0
libtpu: 0.0.40
codegen_flags: <defaults>
</compile_context>

<pallas_src>
import functools

import jax
import jax.numpy as jnp
from jax import lax
from jax.experimental import pallas as pl
from jax.experimental.pallas import tpu as pltpu


def _graph_learner_kernel(emb_ref, w_ref, b_ref, o_ref, *, alpha, tb, n, h, hp):
    """One grid step processes TB batch elements.

    emb_ref : (TB, N, H)    f32 or bf16
    w_ref   : (H, 2*Hp)     fused, lane-padded [alpha*W1 | 0 | alpha*W2 | 0]
    b_ref   : (1, 2*Hp)     fused, lane-padded [alpha*b1 | 0 | alpha*b2 | 0], f32
    o_ref   : (TB, N, N)
    """
    mm_dtype = w_ref.dtype

    # Fused linear for all TB*N node vectors at once (one MXU pass).
    x = emb_ref[...].reshape(tb * n, h)                                   # (TB*N, H)
    nv = jnp.dot(x, w_ref[...], preferred_element_type=jnp.float32) + b_ref[...]
    nv = jnp.tanh(nv)                                                     # alpha folded in

    # Lane-aligned split (Hp is a multiple of 128) -> no cross-lane relayout.
    nv1 = nv[:, :hp].astype(mm_dtype).reshape(tb, n, hp)                  # (TB, N, Hp)
    nv2 = nv[:, hp:].astype(mm_dtype).reshape(tb, n, hp)                  # (TB, N, Hp)

    # Batched skew-symmetric adjacency: S_b = nv1_b @ nv2_b^T, A_b = S_b - S_b^T.
    s = lax.dot_general(nv1, nv2, (((2,), (2,)), ((0,), (0,))),
                        preferred_element_type=jnp.float32)               # (TB, N, N)
    a = s - jnp.transpose(s, (0, 2, 1))
    if alpha != 1.0:
        a = alpha * a
    o_ref[...] = jnp.maximum(jnp.tanh(a), 0.0).astype(o_ref.dtype)


def _step_vmem_bytes(tb, n, h, hp, emb_itemsize, out_itemsize):
    """Rough per-grid-step VMEM working set (pipeline buffers + intermediates)."""
    rows = tb * n
    # double-buffered emb/out pipeline blocks
    blocks = 2 * (rows * h * emb_itemsize + tb * n * n * out_itemsize)
    # once-buffered fused weight + bias
    weights = h * 2 * hp * emb_itemsize + 2 * hp * 4
    # in-kernel intermediates: nv (f32) + cast copies + s/a/out temporaries
    inter = rows * 2 * hp * (4 + emb_itemsize) + 3 * tb * n * n * 4
    return blocks + weights + inter


def _pick_tb(batch, n, h, hp, emb_itemsize, out_itemsize, vmem_budget):
    """Largest divisor of `batch` that fits the VMEM budget and keeps grid >= 2."""
    # Cap at B//2 so the 'parallel' batch axis has length >= 2 (v7x megacore);
    # harmless on single-TC v5e/v6e.
    max_tb = batch if batch < 2 else max(1, batch // 2)
    best = 1
    for tb in range(1, max_tb + 1):
        if batch % tb:
            continue
        if _step_vmem_bytes(tb, n, h, hp, emb_itemsize, out_itemsize) <= vmem_budget:
            best = tb
    return best


def graph_learner(embedding, w1, b1, w2, b2, alpha=1.0, *,
                  block_batch=None, matmul_dtype=None):
    """GraphLearner forward.

    embedding: (B, N, H); w1/w2: (H, H) in (in, out) layout; b1/b2: (H,).
    matmul_dtype=jnp.bfloat16 runs the MXU in bf16 (f32 accumulation) —
    intended for inference; activations feeding the second matmul are bf16.
    """
    B, N, H = embedding.shape
    out_dtype = embedding.dtype
    mm_dtype = jnp.dtype(matmul_dtype) if matmul_dtype is not None else jnp.dtype(embedding.dtype)
    alpha = float(alpha)

    # Each half of the fused weight padded to a 128-lane boundary.
    Hp = max(128, ((H + 127) // 128) * 128)

    # Fuse the two linears and fold alpha: tanh(alpha*(xW+b)) == tanh(x(aW)+ab).
    # (If weights are static across calls, precompute/jit this wrapper to avoid
    #  repeating the concat/pad per call.)
    w12 = jnp.zeros((H, 2 * Hp), dtype=jnp.float32)
    w12 = w12.at[:, :H].set(alpha * w1.astype(jnp.float32))
    w12 = w12.at[:, Hp:Hp + H].set(alpha * w2.astype(jnp.float32))
    b12 = jnp.zeros((1, 2 * Hp), dtype=jnp.float32)
    b12 = b12.at[0, :H].set(alpha * b1.astype(jnp.float32))
    b12 = b12.at[0, Hp:Hp + H].set(alpha * b2.astype(jnp.float32))
    w12 = w12.astype(mm_dtype)
    emb_in = embedding.astype(mm_dtype)

    emb_itemsize = jnp.dtype(mm_dtype).itemsize
    out_itemsize = jnp.dtype(out_dtype).itemsize

    # Generation-aware VMEM budgeting.
    try:
        vmem_cap = int(pltpu.get_tpu_info().vmem_capacity_bytes)
    except Exception:
        vmem_cap = 64 * 1024 * 1024          # conservative (v7x per-TC physical)
    vmem_limit = vmem_cap // 2               # scoped limit we request
    vmem_budget = vmem_limit // 2            # headroom for compiler temporaries

    if block_batch is not None:
        tb = int(block_batch)
    else:
        tb = _pick_tb(B, N, H, Hp, emb_itemsize, out_itemsize, vmem_budget)
    assert B % tb == 0, "block_batch must divide the batch size"

    if _step_vmem_bytes(1, N, H, Hp, emb_itemsize, out_itemsize) > vmem_budget:
        # TODO(synk): add N-tiling grid axis for large graphs instead of failing.
        raise ValueError(
            f"GraphLearner: N={N}, H={H} does not fit VMEM even at block_batch=1; "
            "an N-tiled variant is required for this size.")

    grid = (B // tb,)

    kernel = functools.partial(
        _graph_learner_kernel, alpha=alpha, tb=tb, n=N, h=H, hp=Hp)

    cost = pl.CostEstimate(
        flops=B * (2 * N * H * 2 * Hp + 2 * N * N * Hp),
        transcendentals=B * (2 * N * Hp + N * N),
        bytes_accessed=(B * N * H * emb_itemsize
                        + H * 2 * Hp * emb_itemsize
                        + 2 * Hp * 4
                        + B * N * N * out_itemsize),
    )

    return pl.pallas_call(
        kernel,
        out_shape=jax.ShapeDtypeStruct((B, N, N), out_dtype),
        grid_spec=pltpu.PrefetchScalarGridSpec(
            num_scalar_prefetch=0,
            grid=grid,
            in_specs=[
                pl.BlockSpec((tb, N, H), lambda g: (g, 0, 0)),          # embedding tile
                pl.BlockSpec((H, 2 * Hp), lambda g: (0, 0),
                             pipeline_mode=pl.Buffered(1)),             # fused weights (resident)
                pl.BlockSpec((1, 2 * Hp), lambda g: (0, 0),
                             pipeline_mode=pl.Buffered(1)),             # fused bias (resident)
            ],
            out_specs=pl.BlockSpec((tb, N, N), lambda g: (g, 0, 0)),
        ),
        compiler_params=pltpu.CompilerParams(
            dimension_semantics=("parallel",),
            vmem_limit_bytes=vmem_limit,
        ),
        cost_estimate=cost,
    )(emb_in, w12, b12)


def graph_learner_ref(embedding, w1, b1, w2, b2, alpha=1.0):
    nv1 = jnp.tanh(alpha * (embedding @ w1 + b1))
    nv2 = jnp.tanh(alpha * (embedding @ w2 + b2))
    a = jnp.einsum("bnh,bmh->bnm", nv1, nv2) - jnp.einsum("bnh,bmh->bnm", nv2, nv1)
    return jax.nn.relu(jnp.tanh(alpha * a))


if __name__ == "__main__":
    B, N, H = 2, 16, 32

    key = jax.random.PRNGKey(0)
    k_emb, k_w1, k_b1, k_w2, k_b2 = jax.random.split(key, 5)

    # Deterministic "checkpoint": mimic nn.Linear init scale (1/sqrt(H)),
    # stored directly in the (in, out) layout the kernel expects.
    bound = 1.0 / (H ** 0.5)
    embedding = jax.random.normal(k_emb, (B, N, H), dtype=jnp.float32)
    w1 = jax.random.uniform(k_w1, (H, H), minval=-bound, maxval=bound, dtype=jnp.float32)
    b1 = jax.random.uniform(k_b1, (H,), minval=-bound, maxval=bound, dtype=jnp.float32)
    w2 = jax.random.uniform(k_w2, (H, H), minval=-bound, maxval=bound, dtype=jnp.float32)
    b2 = jax.random.uniform(k_b2, (H,), minval=-bound, maxval=bound, dtype=jnp.float32)

    # f32 path, default TB (grid length >= 2), alpha = 1 and alpha != 1.
    for alpha in (1.0, 0.7):
        ref = graph_learner_ref(embedding, w1, b1, w2, b2, alpha=alpha)
        out = jax.block_until_ready(graph_learner(embedding, w1, b1, w2, b2, alpha=alpha))
        assert out.shape == (B, N, N)
        err = float(jnp.max(jnp.abs(out - ref)))
        assert err < 2e-5, f"f32 mismatch vs reference (alpha={alpha}): {err}"

    # f32 path with TB > 1 (exercises the batched dot_general over TB batches).
    ref = graph_learner_ref(embedding, w1, b1, w2, b2, alpha=1.0)
    out_tb = jax.block_until_ready(
        graph_learner(embedding, w1, b1, w2, b2, alpha=1.0, block_batch=B))
    assert float(jnp.max(jnp.abs(out_tb - ref))) < 2e-5, "f32 mismatch (TB=B)"

    # bf16 MXU fast path (v6e/v7x): looser tolerance, inference-oriented.
    out_bf16 = jax.block_until_ready(
        graph_learner(embedding, w1, b1, w2, b2, alpha=1.0,
                      matmul_dtype=jnp.bfloat16))
    assert out_bf16.shape == (B, N, N)
    assert float(jnp.max(jnp.abs(out_bf16.astype(jnp.float32) - ref))) < 1e-1, \
        "bf16 mismatch vs reference"

    print("KERNEL_OK")
</pallas_src>

<mosaic_0001>
module attributes {stable_mosaic.version = 11 : i64} {
  func.func @_graph_learner_kernel(%arg0: i32, %arg1: memref<1x16x32xf32, #tpu.memory_space<vmem>>, %arg2: memref<32x256xf32, #tpu.memory_space<vmem>>, %arg3: memref<1x256xf32, #tpu.memory_space<vmem>>, %arg4: memref<1x16x16xf32, #tpu.memory_space<vmem>>) attributes {dimension_semantics = [#tpu.dimension_semantics<parallel>], iteration_bounds = array<i64: 2>, scalar_prefetch = 0 : i64, scratch_operands = 0 : i64, tpu.core_type = #tpu.core_type<tc>, window_params = [{transform_indices = @transform_0, window_bounds = array<i64: 1, 16, 32>}, {pipeline_mode = #tpu.pipeline_mode<synchronous>, transform_indices = @transform_1, window_bounds = array<i64: 32, 256>}, {pipeline_mode = #tpu.pipeline_mode<synchronous>, transform_indices = @transform_2, window_bounds = array<i64: 1, 256>}, {transform_indices = @transform_3, window_bounds = array<i64: 1, 16, 16>}]} {
    %c0 = arith.constant 0 : index
    %c0_0 = arith.constant 0 : index
    %c0_1 = arith.constant 0 : index
    %0 = vector.load %arg1[%c0, %c0_0, %c0_1] : memref<1x16x32xf32, #tpu.memory_space<vmem>>, vector<1x16x32xf32>
    %1 = vector.shape_cast %0 : vector<1x16x32xf32> to vector<16x32xf32>
    %c0_2 = arith.constant 0 : index
    %c0_3 = arith.constant 0 : index
    %2 = vector.load %arg2[%c0_2, %c0_3] : memref<32x256xf32, #tpu.memory_space<vmem>>, vector<32x256xf32>
    %cst = arith.constant dense<0.000000e+00> : vector<16x256xf32>
    %3 = tpu.matmul %1, %2, %cst {dimension_numbers = #tpu.dot_dimension_numbers<[1], [0], [0], [1], [0, 0, 1, 1], [], []>} : vector<16x32xf32>, vector<32x256xf32>, vector<16x256xf32> -> vector<16x256xf32>
    %c0_4 = arith.constant 0 : index
    %c0_5 = arith.constant 0 : index
    %4 = vector.load %arg3[%c0_4, %c0_5] : memref<1x256xf32, #tpu.memory_space<vmem>>, vector<1x256xf32>
    %5 = vector.broadcast %4 : vector<1x256xf32> to vector<16x256xf32>
    %6 = arith.addf %3, %5 : vector<16x256xf32>
    %7 = math.tanh %6 : vector<16x256xf32>
    %8 = vector.extract_strided_slice %7 {offsets = [0, 0], sizes = [16, 128], strides = [1, 1]} : vector<16x256xf32> to vector<16x128xf32>
    %9 = vector.shape_cast %8 : vector<16x128xf32> to vector<1x16x128xf32>
    %10 = vector.extract_strided_slice %7 {offsets = [0, 128], sizes = [16, 128], strides = [1, 1]} : vector<16x256xf32> to vector<16x128xf32>
    %11 = vector.shape_cast %10 : vector<16x128xf32> to vector<1x16x128xf32>
    %cst_6 = arith.constant dense<0.000000e+00> : vector<1x16x16xf32>
    %12 = tpu.matmul %9, %11, %cst_6 {dimension_numbers = #tpu.dot_dimension_numbers<[2], [2], [1], [1], [0, 0, 0, 1, 1, 1], [0], [0]>} : vector<1x16x128xf32>, vector<1x16x128xf32>, vector<1x16x16xf32> -> vector<1x16x16xf32>
    %13 = tpu.transpose %12, [0, 2, 1] : vector<1x16x16xf32> -> vector<1x16x16xf32>
    %14 = arith.subf %12, %13 : vector<1x16x16xf32>
    %15 = math.tanh %14 : vector<1x16x16xf32>
    %cst_7 = arith.constant 0.000000e+00 : f32
    %16 = vector.broadcast %cst_7 : f32 to vector<1x16x16xf32>
    %17 = arith.maximumf %15, %16 : vector<1x16x16xf32>
    %c0_8 = arith.constant 0 : index
    %c0_9 = arith.constant 0 : index
    %c0_10 = arith.constant 0 : index
    %18 = vector.load %arg4[%c0_8, %c0_9, %c0_10] : memref<1x16x16xf32, #tpu.memory_space<vmem>>, vector<1x16x16xf32>
    tpu.vector_store %arg4[%c0_8, %c0_9, %c0_10], %17 {strides = array<i32>} : memref<1x16x16xf32, #tpu.memory_space<vmem>>, vector<1x16x16xf32>,
    return
  }
  func.func @transform_0(%arg0: i32) -> (i32, i32, i32) {
    %c0_i32 = arith.constant 0 : i32
    %c0_i32_0 = arith.constant 0 : i32
    %c0_i32_1 = arith.constant 0 : i32
    return %arg0, %c0_i32, %c0_i32_0 : i32, i32, i32
  }
  func.func @transform_1(%arg0: i32) -> (i32, i32) {
    %c0_i32 = arith.constant 0 : i32
    %c0_i32_0 = arith.constant 0 : i32
    %c0_i32_1 = arith.constant 0 : i32
    return %c0_i32, %c0_i32_0 : i32, i32
  }
  func.func @transform_2(%arg0: i32) -> (i32, i32) {
    %c0_i32 = arith.constant 0 : i32
    %c0_i32_0 = arith.constant 0 : i32
    %c0_i32_1 = arith.constant 0 : i32
    return %c0_i32, %c0_i32_0 : i32, i32
  }
  func.func @transform_3(%arg0: i32) -> (i32, i32, i32) {
    %c0_i32 = arith.constant 0 : i32
    %c0_i32_0 = arith.constant 0 : i32
    %c0_i32_1 = arith.constant 0 : i32
    return %arg0, %c0_i32, %c0_i32_0 : i32, i32, i32
  }
}

</mosaic_0001>

<llo_original>
// kernel: tpu_custom_call.1
$region0: #{tpu_custom_call.1}
  #allocation0 [shape = 'u32[]', space=smem, size = 0x4, offset = 0x4, fixed_abs, tag = 'smem constant byte address 0x4 - core index']
  #allocation1 [shape = 'u32[144,128]{1,0:T(1,128)}', space=vmem, size = 0x12000, scoped, tag = 'internal scratch']
  %s0 = inlined_call_operand.hbm [shape: f32[2,16,32], index: 0, kind: input, shape index: {}]
  %s1 = inlined_call_operand.hbm [shape: f32[32,256], index: 1, kind: input, shape index: {}]
  %s2 = inlined_call_operand.vmem [shape: f32[1,256], index: 2, kind: input, shape index: {}]
  %s3 = inlined_call_operand.hbm [shape: f32[2,16,16], index: 3, kind: output, shape index: {}]
  %s4 = sld [smem:[#allocation0]]
  $region53: #{tpu_custom_call.1} parent=0
    _
  %s6 = ssub.s32 1, %s4
  %s7 = scalar_select 0, %s6, %s4
  $region1: #{tpu_custom_call.1} parent=0
    #allocation2 [shape = 'u8[16384]{0}', space=vmem, size = 0x4000, scoped, tag = 'input window, operand 0']
    #allocation3 [shape = 's32[2]{0}', space=sflag, size = 0x8, scoped, tag = 'scoped memory for tpu_custom_call.1']
    #allocation4 [shape = 's32[2]{0}', space=sflag, size = 0x8, scoped, tag = 'scoped memory for tpu_custom_call.1']
    #allocation5 [shape = 'u8[32768]{0}', space=vmem, size = 0x8000, scoped, tag = 'input window, operand 1, single buffered']
    #allocation6 [shape = 's32[1]{0}', space=sflag, size = 0x4, scoped, tag = 'scoped memory for tpu_custom_call.1']
    #allocation7 [shape = 'u8[16384]{0}', space=vmem, size = 0x4000, scoped, tag = 'output window, operand 0']
    %8 = vsyncpa [#allocation3], 0
    %s9 = scalar_lea.sflag [#allocation3], 1
    %10 = vsyncpa %s9, 0
    %11 = vsyncpa [#allocation6], 0
    %12 = vsyncpa [#allocation4], 0
    %s13 = scalar_lea.sflag [#allocation4], 1
    %14 = vsyncpa %s13, 0
    loop: start=0, step=1, limit=4
    $region2: #{tpu_custom_call.1} parent=1 // loop_pre_header
      _
    $region3: #{tpu_custom_call.1} parent=1 // loop_header
      %s16 = sphi 0, %s20
      %p17 = scmp.ge.s32.totalorder %s16, 4
      %s26 = sphi 0, %s28
      %s29 = sphi 0, %s26
      %s30 = sphi 0, %s29
      %s46 = sphi 0, %s30
      %s50 = sphi 0, %s50
      %s52 = sphi 0, %s50
      %s53 = sphi 0, %s52
      %s67 = sphi 0, %s53
      %s71 = sphi 0, %s71
      %s73 = sphi 0, %s71
      %s74 = sphi 0, %s73
      %s88 = sphi 0, %s74
      %s94 = sphi 0, %s96
      %s97 = sphi 0, %s94
      %s98 = sphi 0, %s97
      %s114 = sphi 0, %s98
    $region4: #{tpu_custom_call.1} parent=1 // loop_header_branch
      %19 = sbr.rel (%p17) target = $region8
    $region5: #{tpu_custom_call.1} parent=1 // loop_body
      %s21 = ssub.s32 %s16, 1
      %s22 = ssub.s32 %s16, 2
      %s23 = sadd.s32 %s16, 1
      %s24 = ssub.s32 %s16, %s23
      %p25 = scmp.eq.s32.totalorder %s24, 0
      %s27 = sadd.s32 %s26, 1
      %s28 = scalar_select %p25, %s26, %s27
      %p31 = pneg %p25
      %p32 = scmp.eq.s32.totalorder %s16, 1
      %p33 = por %p31, %p32
      %p34 = scmp.ne.s32.totalorder %s26, %s29
      %p35 = scmp.eq.s32.totalorder %s16, 0
      %p36 = por %p34, %p35
      %p37 = scmp.ne.s32.totalorder %s26, %s29
      %p38 = scmp.eq.s32.totalorder %s21, 1
      %p39 = por %p37, %p38
      %p40 = scmp.ne.s32.totalorder %s29, %s30
      %p41 = scmp.eq.s32.totalorder %s21, 0
      %p42 = por %p40, %p41
      %p43 = scmp.ne.s32.totalorder %s29, %s30
      %p44 = scmp.eq.s32.totalorder %s22, 1
      %p45 = por %p43, %p44
      %p47 = scmp.ne.s32.totalorder %s30, %s46
      %p48 = scmp.eq.s32.totalorder %s22, 0
      %p49 = por %p47, %p48
      %s51 = sadd.s32 %s50, 1
      %p54 = scmp.eq.s32.totalorder %s16, 1
      %p55 = scmp.ne.s32.totalorder %s50, %s52
      %p56 = scmp.eq.s32.totalorder %s16, 0
      %p57 = por %p55, %p56
      %p58 = scmp.ne.s32.totalorder %s50, %s52
      %p59 = scmp.eq.s32.totalorder %s21, 1
      %p60 = por %p58, %p59
      %p61 = scmp.ne.s32.totalorder %s52, %s53
      %p62 = scmp.eq.s32.totalorder %s21, 0
      %p63 = por %p61, %p62
      %p64 = scmp.ne.s32.totalorder %s52, %s53
      %p65 = scmp.eq.s32.totalorder %s22, 1
      %p66 = por %p64, %p65
      %p68 = scmp.ne.s32.totalorder %s53, %s67
      %p69 = scmp.eq.s32.totalorder %s22, 0
      %p70 = por %p68, %p69
      %s72 = sadd.s32 %s71, 1
      %p75 = scmp.eq.s32.totalorder %s16, 1
      %p76 = scmp.ne.s32.totalorder %s71, %s73
      %p77 = scmp.eq.s32.totalorder %s16, 0
      %p78 = por %p76, %p77
      %p79 = scmp.ne.s32.totalorder %s71, %s73
      %p80 = scmp.eq.s32.totalorder %s21, 1
      %p81 = por %p79, %p80
      %p82 = scmp.ne.s32.totalorder %s73, %s74
      %p83 = scmp.eq.s32.totalorder %s21, 0
      %p84 = por %p82, %p83
      %p85 = scmp.ne.s32.totalorder %s73, %s74
      %p86 = scmp.eq.s32.totalorder %s22, 1
      %p87 = por %p85, %p86
      %p89 = scmp.ne.s32.totalorder %s74, %s88
      %p90 = scmp.eq.s32.totalorder %s22, 0
      %p91 = por %p89, %p90
      %s92 = ssub.s32 %s16, %s23
      %p93 = scmp.eq.s32.totalorder %s92, 0
      %s95 = sadd.s32 %s94, 1
      %s96 = scalar_select %p93, %s94, %s95
      %p99 = pneg %p93
      %p100 = scmp.eq.s32.totalorder %s16, 1
      %p101 = por %p99, %p100
      %p102 = scmp.ne.s32.totalorder %s94, %s97
      %p103 = scmp.eq.s32.totalorder %s16, 0
      %p104 = por %p102, %p103
      %p105 = scmp.ne.s32.totalorder %s94, %s97
      %p106 = scmp.eq.s32.totalorder %s21, 1
      %p107 = por %p105, %p106
      %p108 = scmp.ne.s32.totalorder %s97, %s98
      %p109 = scmp.eq.s32.totalorder %s21, 0
      %p110 = por %p108, %p109
      %p111 = scmp.ne.s32.totalorder %s97, %s98
      %p112 = scmp.eq.s32.totalorder %s22, 1
      %p113 = por %p111, %p112
      %p115 = scmp.ne.s32.totalorder %s98, %s114
      %p116 = scmp.eq.s32.totalorder %s22, 0
      %p117 = por %p115, %p116
      %p118 = scmp.le.s32.totalorder 1, %s16
      %p119 = scmp.lt.s32.totalorder %s16, 3
      %p120 = pnand %p118, %p119
      %p121 = pneg %p120
      // Predicated region
      $region9: #{tpu_custom_call.1} parent=5 // pred_check
        _
      $region10: #{tpu_custom_call.1} parent=5 // pred_check_branch
        %123 = sbr.rel (%p120) target = $region12
      $region11: #{tpu_custom_call.1} parent=5 // pred_region
        %s124 = ssub.s32 %s16, 1
        // Predicated region
        $region13: #{tpu_custom_call.1} parent=11 // pred_check
          %p125 = pneg %p63
        $region14: #{tpu_custom_call.1} parent=11 // pred_check_branch
          %127 = sbr.rel (%p125) target = $region16
        $region15: #{tpu_custom_call.1} parent=11 // pred_region
          %s129 = ssub.s32 1024, 1024
          %130 = vsyncadd [#allocation6], %s129
          %s131 = sshll.u32 [#allocation5], 4
          %s132 = int_to_ptr.vmem [resolvable:$true] %s131
          %137 = dma.hbm_to_vmem [thread:$0]  %s1, 1024, %s132, [#allocation6], 256, 256, 16
        $region16: #{tpu_custom_call.1} parent=11 // pred_fallthru
          _
        // Predicated region
        $region17: #{tpu_custom_call.1} parent=11 // pred_check
          %p138 = pneg %p84
        $region18: #{tpu_custom_call.1} parent=11 // pred_check_branch
          %140 = sbr.rel (%p138) target = $region20
        $region19: #{tpu_custom_call.1} parent=11 // pred_region
          _
        $region20: #{tpu_custom_call.1} parent=11 // pred_fallthru
          _
      $region12: #{tpu_custom_call.1} parent=5 // pred_fallthru
        _
      %p141 = scmp.lt.s32.totalorder %s16, 2
      // Predicated region
      $region21: #{tpu_custom_call.1} parent=5 // pred_check
        %p142 = pneg %p141
      $region22: #{tpu_custom_call.1} parent=5 // pred_check_branch
        %144 = sbr.rel (%p142) target = $region24
      $region23: #{tpu_custom_call.1} parent=5 // pred_region
        // Predicated region
        $region25: #{tpu_custom_call.1} parent=23 // pred_check
          %p145 = pneg %p36
        $region26: #{tpu_custom_call.1} parent=23 // pred_check_branch
          %147 = sbr.rel (%p145) target = $region28
        $region27: #{tpu_custom_call.1} parent=23 // pred_region
          %s148 = sand.u32 %s26, 1
          %s149 = scalar_lea.sflag [#allocation3], %s148
          %s150 = sand.u32 %s26, 1
          %s151 = smul.addr %s150, 16
          %s152 = scalar_lea.vmem [#allocation2], %s151
          %s154 = ssub.s32 256, 256
          %155 = vsyncadd %s149, %s154
          %s156 = smul.addr %s16, 2
          %s157 = smul.addr %s156, 128
          %s158 = scalar_lea.hbm %s0, %s157
          %s159 = sshll.u32 %s152, 4
          %s160 = int_to_ptr.vmem [resolvable:$true] %s159
          %165 = dma.hbm_to_vmem [thread:$0]  %s158, 256, %s160, %s149, 128, 128, 8
        $region28: #{tpu_custom_call.1} parent=23 // pred_fallthru
          _
      $region24: #{tpu_custom_call.1} parent=5 // pred_fallthru
        _
      %p166 = scmp.le.s32.totalorder 1, %s16
      %p167 = scmp.lt.s32.totalorder %s16, 3
      %p168 = pnand %p166, %p167
      %p169 = pneg %p168
      // Predicated region
      $region29: #{tpu_custom_call.1} parent=5 // pred_check
        _
      $region30: #{tpu_custom_call.1} parent=5 // pred_check_branch
        %171 = sbr.rel (%p168) target = $region32
      $region31: #{tpu_custom_call.1} parent=5 // pred_region
        %s172 = ssub.s32 %s16, 1
        %s173 = sand.u32 %s29, 1
        %s174 = scalar_lea.sflag [#allocation3], %s173
        %s175 = sand.u32 %s29, 1
        %s176 = smul.addr %s175, 16
        %s177 = scalar_lea.vmem [#allocation2], %s176
        // Predicated region
        $region33: #{tpu_custom_call.1} parent=31 // pred_check
          %p178 = pneg %p42
        $region34: #{tpu_custom_call.1} parent=31 // pred_check_branch
          %180 = sbr.rel (%p178) target = $region36
        $region35: #{tpu_custom_call.1} parent=31 // pred_region
          %181 = dma.done %s174, 256
        $region36: #{tpu_custom_call.1} parent=31 // pred_fallthru
          _
        // Predicated region
        $region37: #{tpu_custom_call.1} parent=31 // pred_check
          %p182 = pneg %p63
        $region38: #{tpu_custom_call.1} parent=31 // pred_check_branch
          %184 = sbr.rel (%p182) target = $region40
        $region39: #{tpu_custom_call.1} parent=31 // pred_region
          %185 = dma.done [#allocation6], 1024
        $region40: #{tpu_custom_call.1} parent=31 // pred_fallthru
          _
        %s186 = sand.u32 %s29, 1
        %s187 = scalar_lea.sflag [#allocation3], %s186
        %s188 = sand.u32 %s29, 1
        %s189 = smul.addr %s188, 16
        %s190 = scalar_lea.vmem [#allocation2], %s189
        %p191 = pneg %p42
        %p192 = pneg %p39
        %p193 = pneg %p63
        %p194 = pneg %p60
        %p195 = pneg %p84
        %p196 = pneg %p81
        %p197 = pneg %p110
        %p198 = pneg %p107
        %s199 = sand.u32 %s97, 1
        %s200 = scalar_lea.sflag [#allocation4], %s199
        %s201 = sand.u32 %s97, 1
        %s202 = smul.addr %s201, 16
        %s203 = scalar_lea.vmem [#allocation7], %s202
        %v204 = vld [vmem:[%s177] sm:$0xff]
        %v205 = vld [vmem:[%s177 + $0x8] sm:$0xff]
        %v206 = vld [vmem:[#allocation5] sm:$0xff]
        %v207 = vld [vmem:[#allocation5 + $0x8] sm:$0xff]
        %v208 = vld [vmem:[#allocation5 + $0x10] sm:$0xff]
        %v209 = vld [vmem:[#allocation5 + $0x18] sm:$0xff]
        %v210 = vld [vmem:[#allocation5 + $0x20] sm:$0xff]
        %v211 = vld [vmem:[#allocation5 + $0x28] sm:$0xff]
        %v212 = vld [vmem:[#allocation5 + $0x30] sm:$0xff]
        %v213 = vld [vmem:[#allocation5 + $0x38] sm:$0xff]
        %v214 = vld [vmem:[%s2] sm:$0x3]
        %v216 = vlaneseq
        %v217 = vshrl.u32 %v216, 7
        %v218 = vsub.s32 0, %v217
        %v219 = vrot.slane %v214, %v218
        %v220 = vlaneseq
        %v221 = vshrl.u32 %v220, 7
        %v222 = vsub.s32 1, %v221
        %v223 = vrot.slane %v214, %v222
        %vm226 = vcmask 261120
        %v228 = vsel %vm226, %v204, 0
        %v231 = vsel %vm226, %v205, 0
        %233 = vmatprep.subr.mxu0 %v207
        %234 = vmatpush1.msra.mxu0 %v206
        %235 = vmatprep.subr.mxu0 %v209
        %236 = vmatpush1.msra.mxu0 %v208
        %237 = vmatprep.subr.mxu0 %v211
        %238 = vmatpush1.msra.mxu0 %v210
        %239 = vmatprep.subr.mxu0 %v213
        %240 = vmatpush1.msra.mxu0 %v212
        %241 = vmatprep.subr.mxu0 0.0
        %242 = vmatpush1.msra.mxu0 0.0
        %243 = vmatprep.subr.mxu0 0.0
        %244 = vmatpush1.msra.mxu0 0.0
        %245 = vmatprep.subr.mxu0 0.0
        %246 = vmatpush1.msra.mxu0 0.0
        %247 = vmatprep.subr.mxu0 0.0
        %248 = vmatpush1.msra.mxu0 0.0
        %249 = vmatprep.subr.mxu0 0.0
        %250 = vmatpush1.msra.mxu0 0.0
        %251 = vmatprep.subr.mxu0 0.0
        %252 = vmatpush1.msra.mxu0 0.0
        %253 = vmatprep.subr.mxu0 0.0
        %254 = vmatpush1.msra.mxu0 0.0
        %255 = vmatprep.subr.mxu0 0.0
        %256 = vmatpush1.msra.mxu0 0.0
        %257 = vmatprep.subr.mxu0 0.0
        %258 = vmatpush1.msra.mxu0 0.0
        %259 = vmatprep.subr.mxu0 0.0
        %260 = vmatpush1.msra.mxu0 0.0
        %261 = vmatprep.subr.mxu0 0.0
        %262 = vmatpush1.msra.mxu0 0.0
        %263 = vmatprep.subr.mxu0 0.0
        %264 = vmatpush1.msra.mxu0 0.0
        %265 = vmatprep.subr.mxu0 0.0
        %266 = vmatpush1.msra.mxu0 0.0
        %267 = vmatprep.subr.mxu0 0.0
        %268 = vmatpush1.msra.mxu0 0.0
        %269 = vmatprep.subr.mxu0 0.0
        %270 = vmatpush1.msra.mxu0 0.0
        %271 = vmatprep.subr.mxu0 0.0
        %272 = vmatpush1.msra.mxu0 0.0
        %273 = vmatprep.subr.mxu0 0.0
        %274 = vmatpush1.msra.mxu0 0.0
        %275 = vmatprep.subr.mxu0 0.0
        %276 = vmatpush1.msra.mxu0 0.0
        %277 = vmatprep.subr.mxu0 0.0
        %278 = vmatpush1.msra.mxu0 0.0
        %279 = vmatprep.subr.mxu0 0.0
        %280 = vmatpush1.msra.mxu0 0.0
        %281 = vmatprep.subr.mxu0 0.0
        %282 = vmatpush1.msra.mxu0 0.0
        %283 = vmatprep.subr.mxu0 0.0
        %284 = vmatpush1.msra.mxu0 0.0
        %285 = vmatprep.subr.mxu0 0.0
        %286 = vmatpush1.msra.mxu0 0.0
        %287 = vmatprep.subr.mxu0 0.0
        %288 = vmatpush1.msra.mxu0 0.0
        %289 = vmatprep.subr.mxu0 0.0
        %290 = vmatpush1.msra.mxu0 0.0
        %291 = vmatprep.subr.mxu0 0.0
        %292 = vmatpush1.msra.mxu0 0.0
        %293 = vmatprep.subr.mxu0 0.0
        %294 = vmatpush1.msra.mxu0 0.0
        %295 = vmatprep.subr.mxu0 0.0
        %296 = vmatpush1.msra.mxu0 0.0
        %297 = vmatprep.mubr.f32.mxu0 0.0
        %298 = vmatmul.mubr.f32.gmra.mrb[0].mxu0 %v228
        %v299 = vpop.f32.mrb[0].mxu0
        %v300 = vadd.f32 %v219, %v299
        %v301 = vpop.f32.mrb[0].mxu0
        %v302 = vadd.f32 %v223, %v301
        %303 = vmatprep.mubr.f32.mxu0 0.0
        %304 = vmatmul.mubr.f32.gmra.mrb[0].mxu0 %v231
        %v305 = vpop.f32.mrb[0].mxu0
        %v306 = vadd.f32 %v219, %v305
        %v307 = vpop.f32.mrb[0].mxu0
        %v308 = vadd.f32 %v223, %v307
        %309 = vdwg.mxu0
        %v310 = vtanh.pop %v300
        %v311 = vtanh.pop %v302
        %v312 = vtanh.pop %v306
        %v313 = vtanh.pop %v308
        %314 = vmatprep.subr.mxu0 0.0
        %315 = vmatpush1.xpose.msra.mxu0 %v311
        %316 = vmatprep.subr.mxu0 0.0
        %317 = vmatpush1.xpose.msra.mxu0 %v313
        %318 = vmatprep.subr.mxu0 0.0
        %319 = vmatpush1.xpose.msra.mxu0 0.0
        %320 = vmatprep.subr.mxu0 0.0
        %321 = vmatpush1.xpose.msra.mxu0 0.0
        %322 = vmatprep.subr.mxu0 0.0
        %323 = vmatpush1.xpose.msra.mxu0 0.0
        %324 = vmatprep.subr.mxu0 0.0
        %325 = vmatpush1.xpose.msra.mxu0 0.0
        %326 = vmatprep.subr.mxu0 0.0
        %327 = vmatpush1.xpose.msra.mxu0 0.0
        %328 = vmatprep.subr.mxu0 0.0
        %329 = vmatpush1.xpose.msra.mxu0 0.0
        %330 = vmatprep.subr.mxu0 0.0
        %331 = vmatpush1.xpose.msra.mxu0 0.0
        %332 = vmatprep.subr.mxu0 0.0
        %333 = vmatpush1.xpose.msra.mxu0 0.0
        %334 = vmatprep.subr.mxu0 0.0
        %335 = vmatpush1.xpose.msra.mxu0 0.0
        %336 = vmatprep.subr.mxu0 0.0
        %337 = vmatpush1.xpose.msra.mxu0 0.0
        %338 = vmatprep.subr.mxu0 0.0
        %339 = vmatpush1.xpose.msra.mxu0 0.0
        %340 = vmatprep.subr.mxu0 0.0
        %341 = vmatpush1.xpose.msra.mxu0 0.0
        %342 = vmatprep.subr.mxu0 0.0
        %343 = vmatpush1.xpose.msra.mxu0 0.0
        %344 = vmatprep.subr.mxu0 0.0
        %345 = vmatpush1.xpose.msra.mxu0 0.0
        %346 = vmatprep.subr.mxu0 0.0
        %347 = vmatpush1.xpose.msra.mxu0 0.0
        %348 = vmatprep.subr.mxu0 0.0
        %349 = vmatpush1.xpose.msra.mxu0 0.0
        %350 = vmatprep.subr.mxu0 0.0
        %351 = vmatpush1.xpose.msra.mxu0 0.0
        %352 = vmatprep.subr.mxu0 0.0
        %353 = vmatpush1.xpose.msra.mxu0 0.0
        %354 = vmatprep.subr.mxu0 0.0
        %355 = vmatpush1.xpose.msra.mxu0 0.0
        %356 = vmatprep.subr.mxu0 0.0
        %357 = vmatpush1.xpose.msra.mxu0 0.0
        %358 = vmatprep.subr.mxu0 0.0
        %359 = vmatpush1.xpose.msra.mxu0 0.0
        %360 = vmatprep.subr.mxu0 0.0
        %361 = vmatpush1.xpose.msra.mxu0 0.0
        %362 = vmatprep.subr.mxu0 0.0
        %363 = vmatpush1.xpose.msra.mxu0 0.0
        %364 = vmatprep.subr.mxu0 0.0
        %365 = vmatpush1.xpose.msra.mxu0 0.0
        %366 = vmatprep.subr.mxu0 0.0
        %367 = vmatpush1.xpose.msra.mxu0 0.0
        %368 = vmatprep.subr.mxu0 0.0
        %369 = vmatpush1.xpose.msra.mxu0 0.0
        %370 = vmatprep.subr.mxu0 0.0
        %371 = vmatpush1.xpose.msra.mxu0 0.0
        %372 = vmatprep.subr.mxu0 0.0
        %373 = vmatpush1.xpose.msra.mxu0 0.0
        %374 = vmatprep.subr.mxu0 0.0
        %375 = vmatpush1.xpose.msra.mxu0 0.0
        %376 = vmatprep.subr.mxu0 0.0
        %377 = vmatpush1.xpose.msra.mxu0 0.0
        %378 = vmatprep.mubr.f32.mxu0 0.0
        %379 = vmatmul.mubr.f32.gmra.mrb[0].mxu0 %v310
        %v380 = vpop.f32.mrb[0].mxu0
        %v381 = vadd.f32 0.0, %v380
        %v382 = vpop.f32.mrb[0].mxu0
        %383 = vmatprep.mubr.f32.mxu0 0.0
        %384 = vmatmul.mubr.f32.gmra.mrb[0].mxu0 %v312
        %v385 = vpop.f32.mrb[0].mxu0
        %v386 = vadd.f32 0.0, %v385
        %v387 = vpop.f32.mrb[0].mxu0
        %388 = vdwg.mxu0
        %389 = vxpose.xlu0.b32.start [1/16] %v381, 128
        %390 = vxpose.xlu0.b32.cont [2/16] %v386, 128
        %391 = vxpose.xlu0.b32.cont [3/16] 0.0, 128
        %392 = vxpose.xlu0.b32.cont [4/16] 0.0, 128
        %393 = vxpose.xlu0.b32.cont [5/16] 0.0, 128
        %394 = vxpose.xlu0.b32.cont [6/16] 0.0, 128
        %395 = vxpose.xlu0.b32.cont [7/16] 0.0, 128
        %396 = vxpose.xlu0.b32.cont [8/16] 0.0, 128
        %397 = vxpose.xlu0.b32.cont [9/16] 0.0, 128
        %398 = vxpose.xlu0.b32.cont [10/16] 0.0, 128
        %399 = vxpose.xlu0.b32.cont [11/16] 0.0, 128
        %400 = vxpose.xlu0.b32.cont [12/16] 0.0, 128
        %401 = vxpose.xlu0.b32.cont [13/16] 0.0, 128
        %402 = vxpose.xlu0.b32.cont [14/16] 0.0, 128
        %403 = vxpose.xlu0.b32.cont [15/16] 0.0, 128
        %404 = vxpose.xlu0.b32.end [16/16] 0.0, 128
        %v405 = vpop.trf.xlu0
        %v406 = vpop.trf.xlu0
        %v407 = vpop.trf.xlu0
        %v408 = vpop.trf.xlu0
        %v409 = vpop.trf.xlu0
        %v410 = vpop.trf.xlu0
        %v411 = vpop.trf.xlu0
        %v412 = vpop.trf.xlu0
        %v413 = vpop.trf.xlu0
        %v414 = vpop.trf.xlu0
        %v415 = vpop.trf.xlu0
        %v416 = vpop.trf.xlu0
        %v417 = vpop.trf.xlu0
        %v418 = vpop.trf.xlu0
        %v419 = vpop.trf.xlu0
        %v420 = vpop.trf.xlu0
        %v421 = vsub.f32 %v381, %v405
        %v422 = vsub.f32 %v386, %v406
        %v423 = vtanh.pop %v421
        %v424 = vtanh.pop %v422
        %v425 = vmax.f32 %v423, 0.0
        %v426 = vmax.f32 %v424, 0.0
        %vm427 = vcmask 130048
        %428 = vst.msk [vmem:[%s203] sm:$0xff] %vm427, %v425
        %429 = vst.msk [vmem:[%s203 + $0x8] sm:$0xff] %vm427, %v426
        %s430 = sand.u32 %s97, 1
        %s431 = scalar_lea.sflag [#allocation4], %s430
        %s432 = sand.u32 %s97, 1
        %s433 = smul.addr %s432, 16
        %s434 = scalar_lea.vmem [#allocation7], %s433
        // Predicated region
        $region41: #{tpu_custom_call.1} parent=31 // pred_check
          %p435 = pneg %p107
        $region42: #{tpu_custom_call.1} parent=31 // pred_check_branch
          %437 = sbr.rel (%p435) target = $region44
        $region43: #{tpu_custom_call.1} parent=31 // pred_region
          %s439 = ssub.s32 256, 256
          %440 = vsyncadd %s431, %s439
          %s441 = smul.addr %s21, 2
          %s442 = smul.addr %s441, 128
          %s443 = scalar_lea.hbm %s3, %s442
          %s444 = sshll.u32 %s434, 4
          %s445 = int_to_ptr.vmem [resolvable:$true] %s444
          %450 = dma.vmem_to_hbm [thread:$0]  %s445, 256, %s443, %s431, 128, 128, 8
        $region44: #{tpu_custom_call.1} parent=31 // pred_fallthru
          _
      $region32: #{tpu_custom_call.1} parent=5 // pred_fallthru
        _
      %p451 = scmp.le.s32.totalorder 2, %s16
      // Predicated region
      $region45: #{tpu_custom_call.1} parent=5 // pred_check
        %p452 = pneg %p451
      $region46: #{tpu_custom_call.1} parent=5 // pred_check_branch
        %454 = sbr.rel (%p452) target = $region48
      $region47: #{tpu_custom_call.1} parent=5 // pred_region
        %s455 = ssub.s32 %s16, 2
        // Predicated region
        $region49: #{tpu_custom_call.1} parent=47 // pred_check
          %p456 = pneg %p113
        $region50: #{tpu_custom_call.1} parent=47 // pred_check_branch
          %458 = sbr.rel (%p456) target = $region52
        $region51: #{tpu_custom_call.1} parent=47 // pred_region
          %s459 = sand.u32 %s98, 1
          %s460 = scalar_lea.sflag [#allocation4], %s459
          %s461 = sand.u32 %s98, 1
          %s462 = smul.addr %s461, 16
          %s463 = scalar_lea.vmem [#allocation7], %s462
          %464 = dma.done %s460, 256
        $region52: #{tpu_custom_call.1} parent=47 // pred_fallthru
          _
      $region48: #{tpu_custom_call.1} parent=5 // pred_fallthru
        _
    $region6: #{tpu_custom_call.1} parent=1 // loop_footer
      %s20 = sadd.s32 1, %s16
    $region7: #{tpu_custom_call.1} parent=1 // loop_footer_branch
      %15 = sbr.rel target = $region3
    $region8: #{tpu_custom_call.1} parent=1 // loop_exit
      _
    %465 = vsyncpa [#allocation3], 1
    %s466 = scalar_lea.sflag [#allocation3], 1
    %467 = vsyncpa %s466, 1
    %468 = vsyncpa [#allocation6], 1
    %469 = vsyncpa [#allocation4], 1
    %s470 = scalar_lea.sflag [#allocation4], 1
    %471 = vsyncpa %s470, 1

</llo_original>
